<compile_context>
chip_gen: v6e
topology: v6e:2x2x1
jax: 0.10.0
libtpu: 0.0.40
codegen_flags: <defaults>
</compile_context>

<pallas_src>
import jax
import jax.numpy as jnp
import numpy as np
from jax import lax
from jax.experimental import pallas as pl
from jax.experimental.pallas import tpu as pltpu

# ----------------------------- configuration -----------------------------
NUM_LANDMARKS = 8                 # K
K1 = NUM_LANDMARKS + 1            # K + 1
NUM_CLASSES = 32                  # scaled down from 2000
C0, C1, C2, C3, C4 = 16, 32, 48, 64, 128   # scaled-down ResNet widths
C_CAT = C3 + C4                   # channels after torch.cat((x_up, l3), dim=1)
BN_EPS = 1e-5


# ----------------------------- backbone glue ------------------------------
def conv2d(x, w, stride, padding):
    return lax.conv_general_dilated(
        x, w, window_strides=(stride, stride),
        padding=[(padding, padding), (padding, padding)],
        dimension_numbers=("NCHW", "OIHW", "NCHW"))


def bn_eval(x, gamma, beta, mean, var):
    inv = gamma / jnp.sqrt(var + BN_EPS)
    return x * inv[None, :, None, None] + (beta - mean * inv)[None, :, None, None]


def bn_relu(x):
    c = x.shape[1]
    ones = jnp.ones((c,), jnp.float32)
    zeros = jnp.zeros((c,), jnp.float32)
    return jax.nn.relu(bn_eval(x, ones, zeros, zeros, ones))


def maxpool_3x3_s2(x):
    return lax.reduce_window(
        x, -jnp.inf, lax.max,
        window_dimensions=(1, 1, 3, 3),
        window_strides=(1, 1, 2, 2),
        padding=[(0, 0), (0, 0), (1, 1), (1, 1)])


def bilinear_upsample_align_corners(x, out_hw):
    # matches torch.nn.functional.upsample_bilinear (align_corners=True)
    B, C, H, W = x.shape
    OH, OW = out_hw
    ys = jnp.linspace(0.0, H - 1.0, OH) if OH > 1 else jnp.zeros((OH,), jnp.float32)
    xs = jnp.linspace(0.0, W - 1.0, OW) if OW > 1 else jnp.zeros((OW,), jnp.float32)
    y0 = jnp.clip(jnp.floor(ys).astype(jnp.int32), 0, H - 1)
    y1 = jnp.clip(y0 + 1, 0, H - 1)
    x0 = jnp.clip(jnp.floor(xs).astype(jnp.int32), 0, W - 1)
    x1 = jnp.clip(x0 + 1, 0, W - 1)
    wy = (ys - y0.astype(x.dtype))[None, None, :, None]
    wx = (xs - x0.astype(x.dtype))[None, None, None, :]

    def g(yi, xi):
        return x[:, :, yi, :][:, :, :, xi]

    top = g(y0, x0) * (1.0 - wx) + g(y0, x1) * wx
    bot = g(y1, x0) * (1.0 - wx) + g(y1, x1) * wx
    return top * (1.0 - wy) + bot * wy


def backbone(params, x):
    y = bn_relu(conv2d(x, params["conv1"], stride=2, padding=3))   # conv1+bn1+relu
    y = maxpool_3x3_s2(y)                                          # maxpool
    y = bn_relu(conv2d(y, params["layer1"], stride=1, padding=1))  # layer1
    y = bn_relu(conv2d(y, params["layer2"], stride=2, padding=1))  # layer2
    l3 = bn_relu(conv2d(y, params["layer3"], stride=2, padding=1)) # layer3
    x4 = bn_relu(conv2d(l3, params["layer4"], stride=2, padding=1))# layer4
    return l3, x4


# --------------------------- Pallas head kernel ----------------------------
def head_kernel(x_ref, w2_ref, asq_ref, modt_ref, wclsT_ref,
                feat_ref, maps_ref, scores_ref):
    # x: (C, B*HW) lane-dense slab (whole batch in one invocation)
    x = x_ref[...]
    B = feat_ref.shape[0]
    HW = x.shape[1] // B
    inv_hw = 1.0 / float(HW)

    # logits = 2*W@x - a_sq   (b_sq cancels in the softmax over the landmark axis)
    logits = jnp.dot(w2_ref[...], x, preferred_element_type=jnp.float32)   # (K1, B*HW)
    logits = logits - asq_ref[...]                                         # broadcast (K1,1)

    # Softmax over the landmark (sublane) axis; columns of different batch
    # elements never mix, so the fused (B*HW)-lane layout is exact.
    m = jnp.max(logits, axis=0, keepdims=True)                             # XLU
    e = jnp.exp(logits - m)                                                # EUP
    denom = jnp.sum(e, axis=0, keepdims=True)                              # XLU
    maps = e * pl.reciprocal(denom, approx=True)                           # (K1, B*HW)
    maps_ref[...] = maps                                                   # full-lane store

    # Per-batch landmark-weighted pooling + modulation + class scores,
    # emitted transposed (lane-dense last dims C / NC).
    for b in range(B):                       # B is static & tiny -> unrolled
        lo, hi = b * HW, (b + 1) * HW
        mb = maps[:, lo:hi]                  # (K1, HW)  static lane slice
        xb = x[:, lo:hi]                     # (C,  HW)
        # feats_T[k, c] = mean_hw maps[k,hw] * x[c,hw]  (contract over lanes)
        feats_t = lax.dot_general(
            mb, xb, (((1,), (1,)), ((), ())),
            preferred_element_type=jnp.float32) * inv_hw                   # (K1, C)
        feat_ref[b] = feats_t
        modulated = feats_t * modt_ref[...]                                # (K1, C)
        scores_ref[b] = jnp.dot(modulated, wclsT_ref[...],
                                preferred_element_type=jnp.float32)        # (K1, NC)


def landmark_head(x_cat, w_lm, modulation, w_cls):
    B, C, H, W = x_cat.shape
    HW = H * W
    K = w_lm.shape[0]            # K1
    NC = w_cls.shape[0]
    f32 = jnp.float32

    # Lane-dense slab: channels on sublanes, batch*spatial on lanes (B*HW = 128).
    xf = jnp.transpose(x_cat.reshape(B, C, HW), (1, 0, 2)).reshape(C, B * HW)
    xf = xf.astype(f32)
    # Weight-only terms hoisted out of the kernel.
    w2 = (2.0 * w_lm).astype(f32)                                    # (K1, C)
    a_sq = jnp.sum(w_lm.astype(f32) ** 2, axis=1, keepdims=True)     # (K1, 1)
    mod_t = jnp.transpose(modulation[0].astype(f32))                 # (K1, C)
    w_cls_t = jnp.transpose(w_cls.astype(f32))                       # (C, NC)

    feat_t, maps_flat, scores_t = pl.pallas_call(
        head_kernel,
        out_shape=(jax.ShapeDtypeStruct((B, K, C), f32),       # feats (transposed)
                   jax.ShapeDtypeStruct((K, B * HW), f32),     # maps (fused batch)
                   jax.ShapeDtypeStruct((B, K, NC), f32)),     # scores (transposed)
        grid_spec=pltpu.PrefetchScalarGridSpec(
            num_scalar_prefetch=0,
            grid=(1,),
            in_specs=[pl.BlockSpec((C, B * HW), lambda i: (0, 0)),
                      pl.BlockSpec((K, C), lambda i: (0, 0)),
                      pl.BlockSpec((K, 1), lambda i: (0, 0)),
                      pl.BlockSpec((K, C), lambda i: (0, 0)),
                      pl.BlockSpec((C, NC), lambda i: (0, 0))],
            out_specs=(pl.BlockSpec((B, K, C), lambda i: (0, 0, 0)),
                       pl.BlockSpec((K, B * HW), lambda i: (0, 0)),
                       pl.BlockSpec((B, K, NC), lambda i: (0, 0, 0)))),
        compiler_params=pltpu.CompilerParams(
            dimension_semantics=("arbitrary",)),
    )(xf, w2, a_sq, mod_t, w_cls_t)

    # Back to the torch module's output layouts (tiny XLA transposes).
    feats = jnp.transpose(feat_t, (0, 2, 1))                              # (B, C, K1)
    maps = jnp.transpose(maps_flat.reshape(K, B, H, W), (1, 0, 2, 3))     # (B, K1, H, W)
    scores = jnp.transpose(scores_t, (0, 2, 1))                           # (B, NC, K1)
    return feats, maps, scores


# ------------------------------ full forward -------------------------------
def individual_landmark_net_forward(params, x):
    l3, x4 = backbone(params, x)
    x_up = bilinear_upsample_align_corners(x4, (l3.shape[-2], l3.shape[-1]))
    x_cat = jnp.concatenate([x_up, l3], axis=1)                     # (B, C_CAT, H, W)
    all_features, maps, scores = landmark_head(
        x_cat, params["fc_landmarks"], params["modulation"], params["fc_class"])
    # (dropout_full_landmarks is identity in eval mode)
    return all_features, maps, scores, x_cat


# ------------------------- plain-JAX head reference ------------------------
def head_reference(x_cat, w_lm, modulation, w_cls):
    ab = jnp.einsum("kc,bchw->bkhw", w_lm, x_cat)
    b_sq = jnp.sum(x_cat ** 2, axis=1, keepdims=True)
    a_sq = jnp.sum(w_lm ** 2, axis=1)[None, :, None, None]
    maps = jax.nn.softmax(-(b_sq - 2.0 * ab + a_sq), axis=1)
    feats = jnp.mean(maps[:, None] * x_cat[:, :, None], axis=(-1, -2))
    modulated = feats * modulation
    scores = jnp.einsum("nc,bck->bnk", w_cls, modulated)
    return feats, maps, scores


# --------------------------- deterministic params --------------------------
def init_params(key):
    ks = jax.random.split(key, 7)

    def conv_w(k, o, i, kh, kw):
        fan_in = i * kh * kw
        return jax.random.normal(k, (o, i, kh, kw), jnp.float32) / jnp.sqrt(fan_in)

    return {
        "conv1": conv_w(ks[0], C0, 3, 7, 7),
        "layer1": conv_w(ks[1], C1, C0, 3, 3),
        "layer2": conv_w(ks[2], C2, C1, 3, 3),
        "layer3": conv_w(ks[3], C3, C2, 3, 3),
        "layer4": conv_w(ks[4], C4, C3, 3, 3),
        # fc_landmarks: Conv2d(C_CAT, K1, 1, bias=False) -> weight (K1, C_CAT)
        "fc_landmarks": jax.random.normal(ks[5], (K1, C_CAT), jnp.float32)
                        / jnp.sqrt(C_CAT),
        # fc_class_landmarks: Linear(C_CAT, NUM_CLASSES, bias=False)
        "fc_class": jax.random.normal(ks[6], (NUM_CLASSES, C_CAT), jnp.float32)
                    / jnp.sqrt(C_CAT),
        # modulation: Parameter(ones((1, C_CAT, K1)))
        "modulation": jnp.ones((1, C_CAT, K1), jnp.float32),
    }


# ----------------------------------- main -----------------------------------
if __name__ == "__main__":
    key = jax.random.PRNGKey(0)
    pkey, xkey = jax.random.split(key)
    params = init_params(pkey)

    # Input image, NCHW: (batch=2, channels=3, 128, 128)
    x = jax.random.normal(xkey, (2, 3, 128, 128), jnp.float32)

    fwd = jax.jit(individual_landmark_net_forward)
    all_features, maps, scores, x_cat = fwd(params, x)
    jax.block_until_ready((all_features, maps, scores))

    # sanity: shapes match the torch module's conventions
    B = x.shape[0]
    Hf, Wf = x_cat.shape[-2], x_cat.shape[-1]
    assert all_features.shape == (B, C_CAT, K1)
    assert maps.shape == (B, K1, Hf, Wf)
    assert scores.shape == (B, NUM_CLASSES, K1)

    # sanity: compare the Pallas head against a plain-JAX reference
    ref_f, ref_m, ref_s = head_reference(
        x_cat, params["fc_landmarks"], params["modulation"], params["fc_class"])
    np.testing.assert_allclose(np.asarray(maps), np.asarray(ref_m),
                               rtol=2e-2, atol=2e-2)
    np.testing.assert_allclose(np.asarray(all_features), np.asarray(ref_f),
                               rtol=2e-2, atol=2e-2)
    np.testing.assert_allclose(np.asarray(scores), np.asarray(ref_s),
                               rtol=2e-2, atol=2e-2)

    print("KERNEL_OK")
</pallas_src>

<mosaic_0001>
module attributes {stable_mosaic.version = 11 : i64} {
  func.func @head_kernel(%arg0: i32, %arg1: memref<192x128xf32, #tpu.memory_space<vmem>>, %arg2: memref<9x192xf32, #tpu.memory_space<vmem>>, %arg3: memref<9x1xf32, #tpu.memory_space<vmem>>, %arg4: memref<9x192xf32, #tpu.memory_space<vmem>>, %arg5: memref<192x32xf32, #tpu.memory_space<vmem>>, %arg6: memref<2x9x192xf32, #tpu.memory_space<vmem>>, %arg7: memref<9x128xf32, #tpu.memory_space<vmem>>, %arg8: memref<2x9x32xf32, #tpu.memory_space<vmem>>) attributes {dimension_semantics = [#tpu.dimension_semantics<arbitrary>], iteration_bounds = array<i64: 1>, scalar_prefetch = 0 : i64, scratch_operands = 0 : i64, tpu.core_type = #tpu.core_type<tc>, window_params = [{pipeline_mode = #tpu.pipeline_mode<synchronous>, transform_indices = @transform_0, window_bounds = array<i64: 192, 128>}, {pipeline_mode = #tpu.pipeline_mode<synchronous>, transform_indices = @transform_1, window_bounds = array<i64: 9, 192>}, {pipeline_mode = #tpu.pipeline_mode<synchronous>, transform_indices = @transform_2, window_bounds = array<i64: 9, 1>}, {pipeline_mode = #tpu.pipeline_mode<synchronous>, transform_indices = @transform_3, window_bounds = array<i64: 9, 192>}, {pipeline_mode = #tpu.pipeline_mode<synchronous>, transform_indices = @transform_4, window_bounds = array<i64: 192, 32>}, {pipeline_mode = #tpu.pipeline_mode<synchronous>, transform_indices = @transform_5, window_bounds = array<i64: 2, 9, 192>}, {pipeline_mode = #tpu.pipeline_mode<synchronous>, transform_indices = @transform_6, window_bounds = array<i64: 9, 128>}, {pipeline_mode = #tpu.pipeline_mode<synchronous>, transform_indices = @transform_7, window_bounds = array<i64: 2, 9, 32>}]} {
    %c0 = arith.constant 0 : index
    %c0_0 = arith.constant 0 : index
    %0 = vector.load %arg1[%c0, %c0_0] : memref<192x128xf32, #tpu.memory_space<vmem>>, vector<192x128xf32>
    %c0_1 = arith.constant 0 : index
    %c0_2 = arith.constant 0 : index
    %1 = vector.load %arg2[%c0_1, %c0_2] : memref<9x192xf32, #tpu.memory_space<vmem>>, vector<9x192xf32>
    %cst = arith.constant dense<0.000000e+00> : vector<9x128xf32>
    %2 = tpu.matmul %1, %0, %cst {dimension_numbers = #tpu.dot_dimension_numbers<[1], [0], [0], [1], [0, 0, 1, 1], [], []>} : vector<9x192xf32>, vector<192x128xf32>, vector<9x128xf32> -> vector<9x128xf32>
    %c0_3 = arith.constant 0 : index
    %c0_4 = arith.constant 0 : index
    %3 = vector.load %arg3[%c0_3, %c0_4] : memref<9x1xf32, #tpu.memory_space<vmem>>, vector<9x1xf32>
    %4 = vector.broadcast %3 : vector<9x1xf32> to vector<9x128xf32>
    %5 = arith.subf %2, %4 : vector<9x128xf32>
    %cst_5 = arith.constant dense<0xFF800000> : vector<128xf32>
    %6 = vector.multi_reduction <maximumf>, %5, %cst_5 [0] : vector<9x128xf32> to vector<128xf32>
    %7 = vector.shape_cast %6 : vector<128xf32> to vector<1x128xf32>
    %8 = vector.broadcast %7 : vector<1x128xf32> to vector<9x128xf32>
    %9 = arith.subf %5, %8 : vector<9x128xf32>
    %10 = math.exp %9 : vector<9x128xf32>
    %cst_6 = arith.constant dense<0.000000e+00> : vector<128xf32>
    %11 = vector.multi_reduction <add>, %10, %cst_6 [0] : vector<9x128xf32> to vector<128xf32>
    %12 = vector.shape_cast %11 : vector<128xf32> to vector<1x128xf32>
    %13 = tpu.reciprocal %12 {approx = true} : vector<1x128xf32> -> vector<1x128xf32>
    %14 = vector.broadcast %13 : vector<1x128xf32> to vector<9x128xf32>
    %15 = arith.mulf %10, %14 : vector<9x128xf32>
    %c0_7 = arith.constant 0 : index
    %c0_8 = arith.constant 0 : index
    %16 = vector.load %arg7[%c0_7, %c0_8] : memref<9x128xf32, #tpu.memory_space<vmem>>, vector<9x128xf32>
    tpu.vector_store %arg7[%c0_7, %c0_8], %15 {strides = array<i32>} : memref<9x128xf32, #tpu.memory_space<vmem>>, vector<9x128xf32>,
    %17 = vector.extract_strided_slice %15 {offsets = [0, 0], sizes = [9, 64], strides = [1, 1]} : vector<9x128xf32> to vector<9x64xf32>
    %18 = vector.extract_strided_slice %0 {offsets = [0, 0], sizes = [192, 64], strides = [1, 1]} : vector<192x128xf32> to vector<192x64xf32>
    %cst_9 = arith.constant dense<0.000000e+00> : vector<9x192xf32>
    %19 = tpu.matmul %17, %18, %cst_9 {dimension_numbers = #tpu.dot_dimension_numbers<[1], [1], [0], [0], [0, 0, 1, 0], [], []>} : vector<9x64xf32>, vector<192x64xf32>, vector<9x192xf32> -> vector<9x192xf32>
    %cst_10 = arith.constant 1.562500e-02 : f32
    %20 = vector.broadcast %cst_10 : f32 to vector<9x192xf32>
    %21 = arith.mulf %19, %20 : vector<9x192xf32>
    %c0_11 = arith.constant 0 : index
    %c0_12 = arith.constant 0 : index
    %c0_13 = arith.constant 0 : index
    %22 = vector.load %arg6[%c0_11, %c0_12, %c0_13] : memref<2x9x192xf32, #tpu.memory_space<vmem>>, vector<1x9x192xf32>
    %23 = vector.shape_cast %22 : vector<1x9x192xf32> to vector<9x192xf32>
    %24 = vector.shape_cast %21 : vector<9x192xf32> to vector<1x9x192xf32>
    tpu.vector_store %arg6[%c0_11, %c0_12, %c0_13], %24 {strides = array<i32>} : memref<2x9x192xf32, #tpu.memory_space<vmem>>, vector<1x9x192xf32>,
    %c0_14 = arith.constant 0 : index
    %c0_15 = arith.constant 0 : index
    %25 = vector.load %arg4[%c0_14, %c0_15] : memref<9x192xf32, #tpu.memory_space<vmem>>, vector<9x192xf32>
    %26 = arith.mulf %21, %25 : vector<9x192xf32>
    %c0_16 = arith.constant 0 : index
    %c0_17 = arith.constant 0 : index
    %27 = vector.load %arg5[%c0_16, %c0_17] : memref<192x32xf32, #tpu.memory_space<vmem>>, vector<192x32xf32>
    %cst_18 = arith.constant dense<0.000000e+00> : vector<9x32xf32>
    %28 = tpu.matmul %26, %27, %cst_18 {dimension_numbers = #tpu.dot_dimension_numbers<[1], [0], [0], [1], [0, 0, 1, 1], [], []>} : vector<9x192xf32>, vector<192x32xf32>, vector<9x32xf32> -> vector<9x32xf32>
    %c0_19 = arith.constant 0 : index
    %c0_20 = arith.constant 0 : index
    %c0_21 = arith.constant 0 : index
    %29 = vector.load %arg8[%c0_19, %c0_20, %c0_21] : memref<2x9x32xf32, #tpu.memory_space<vmem>>, vector<1x9x32xf32>
    %30 = vector.shape_cast %29 : vector<1x9x32xf32> to vector<9x32xf32>
    %31 = vector.shape_cast %28 : vector<9x32xf32> to vector<1x9x32xf32>
    tpu.vector_store %arg8[%c0_19, %c0_20, %c0_21], %31 {strides = array<i32>} : memref<2x9x32xf32, #tpu.memory_space<vmem>>, vector<1x9x32xf32>,
    %32 = vector.extract_strided_slice %15 {offsets = [0, 64], sizes = [9, 64], strides = [1, 1]} : vector<9x128xf32> to vector<9x64xf32>
    %33 = vector.extract_strided_slice %0 {offsets = [0, 64], sizes = [192, 64], strides = [1, 1]} : vector<192x128xf32> to vector<192x64xf32>
    %cst_22 = arith.constant dense<0.000000e+00> : vector<9x192xf32>
    %34 = tpu.matmul %32, %33, %cst_22 {dimension_numbers = #tpu.dot_dimension_numbers<[1], [1], [0], [0], [0, 0, 1, 0], [], []>} : vector<9x64xf32>, vector<192x64xf32>, vector<9x192xf32> -> vector<9x192xf32>
    %cst_23 = arith.constant 1.562500e-02 : f32
    %35 = vector.broadcast %cst_23 : f32 to vector<9x192xf32>
    %36 = arith.mulf %34, %35 : vector<9x192xf32>
    %c1 = arith.constant 1 : index
    %c0_24 = arith.constant 0 : index
    %c0_25 = arith.constant 0 : index
    %37 = vector.load %arg6[%c1, %c0_24, %c0_25] : memref<2x9x192xf32, #tpu.memory_space<vmem>>, vector<1x9x192xf32>
    %38 = vector.shape_cast %37 : vector<1x9x192xf32> to vector<9x192xf32>
    %39 = vector.shape_cast %36 : vector<9x192xf32> to vector<1x9x192xf32>
    tpu.vector_store %arg6[%c1, %c0_24, %c0_25], %39 {strides = array<i32>} : memref<2x9x192xf32, #tpu.memory_space<vmem>>, vector<1x9x192xf32>,
    %c0_26 = arith.constant 0 : index
    %c0_27 = arith.constant 0 : index
    %40 = vector.load %arg4[%c0_26, %c0_27] : memref<9x192xf32, #tpu.memory_space<vmem>>, vector<9x192xf32>
    %41 = arith.mulf %36, %40 : vector<9x192xf32>
    %c0_28 = arith.constant 0 : index
    %c0_29 = arith.constant 0 : index
    %42 = vector.load %arg5[%c0_28, %c0_29] : memref<192x32xf32, #tpu.memory_space<vmem>>, vector<192x32xf32>
    %cst_30 = arith.constant dense<0.000000e+00> : vector<9x32xf32>
    %43 = tpu.matmul %41, %42, %cst_30 {dimension_numbers = #tpu.dot_dimension_numbers<[1], [0], [0], [1], [0, 0, 1, 1], [], []>} : vector<9x192xf32>, vector<192x32xf32>, vector<9x32xf32> -> vector<9x32xf32>
    %c1_31 = arith.constant 1 : index
    %c0_32 = arith.constant 0 : index
    %c0_33 = arith.constant 0 : index
    %44 = vector.load %arg8[%c1_31, %c0_32, %c0_33] : memref<2x9x32xf32, #tpu.memory_space<vmem>>, vector<1x9x32xf32>
    %45 = vector.shape_cast %44 : vector<1x9x32xf32> to vector<9x32xf32>
    %46 = vector.shape_cast %43 : vector<9x32xf32> to vector<1x9x32xf32>
    tpu.vector_store %arg8[%c1_31, %c0_32, %c0_33], %46 {strides = array<i32>} : memref<2x9x32xf32, #tpu.memory_space<vmem>>, vector<1x9x32xf32>,
    return
  }
  func.func @transform_0(%arg0: i32) -> (i32, i32) {
    %c0_i32 = arith.constant 0 : i32
    %c0_i32_0 = arith.constant 0 : i32
    %c0_i32_1 = arith.constant 0 : i32
    return %c0_i32, %c0_i32_0 : i32, i32
  }
  func.func @transform_1(%arg0: i32) -> (i32, i32) {
    %c0_i32 = arith.constant 0 : i32
    %c0_i32_0 = arith.constant 0 : i32
    %c0_i32_1 = arith.constant 0 : i32
    return %c0_i32, %c0_i32_0 : i32, i32
  }
  func.func @transform_2(%arg0: i32) -> (i32, i32) {
    %c0_i32 = arith.constant 0 : i32
    %c0_i32_0 = arith.constant 0 : i32
    %c0_i32_1 = arith.constant 0 : i32
    return %c0_i32, %c0_i32_0 : i32, i32
  }
  func.func @transform_3(%arg0: i32) -> (i32, i32) {
    %c0_i32 = arith.constant 0 : i32
    %c0_i32_0 = arith.constant 0 : i32
    %c0_i32_1 = arith.constant 0 : i32
    return %c0_i32, %c0_i32_0 : i32, i32
  }
  func.func @transform_4(%arg0: i32) -> (i32, i32) {
    %c0_i32 = arith.constant 0 : i32
    %c0_i32_0 = arith.constant 0 : i32
    %c0_i32_1 = arith.constant 0 : i32
    return %c0_i32, %c0_i32_0 : i32, i32
  }
  func.func @transform_5(%arg0: i32) -> (i32, i32, i32) {
    %c0_i32 = arith.constant 0 : i32
    %c0_i32_0 = arith.constant 0 : i32
    %c0_i32_1 = arith.constant 0 : i32
    %c0_i32_2 = arith.constant 0 : i32
    return %c0_i32, %c0_i32_0, %c0_i32_1 : i32, i32, i32
  }
  func.func @transform_6(%arg0: i32) -> (i32, i32) {
    %c0_i32 = arith.constant 0 : i32
    %c0_i32_0 = arith.constant 0 : i32
    %c0_i32_1 = arith.constant 0 : i32
    return %c0_i32, %c0_i32_0 : i32, i32
  }
  func.func @transform_7(%arg0: i32) -> (i32, i32, i32) {
    %c0_i32 = arith.constant 0 : i32
    %c0_i32_0 = arith.constant 0 : i32
    %c0_i32_1 = arith.constant 0 : i32
    %c0_i32_2 = arith.constant 0 : i32
    return %c0_i32, %c0_i32_0, %c0_i32_1 : i32, i32, i32
  }
}

</mosaic_0001>

<llo_original>
// kernel: individual_landmark_net_forward.1
$region0: #{individual_landmark_net_forward.1}
  #allocation0 [shape = 'u32[]', space=smem, size = 0x4, offset = 0x4, fixed_abs, tag = 'smem constant byte address 0x4 - core index']
  #allocation1 [shape = 'u32[144,128]{1,0:T(1,128)}', space=vmem, size = 0x12000, scoped, tag = 'internal scratch']
  %s0 = inlined_call_operand.vmem [shape: f32[192,128], index: 0, kind: input, shape index: {}]
  %s1 = inlined_call_operand.vmem [shape: f32[9,192], index: 1, kind: input, shape index: {}]
  %s2 = inlined_call_operand.vmem [shape: f32[9,1], index: 2, kind: input, shape index: {}]
  %s3 = inlined_call_operand.vmem [shape: f32[9,192], index: 3, kind: input, shape index: {}]
  %s4 = inlined_call_operand.vmem [shape: f32[192,32], index: 4, kind: input, shape index: {}]
  %s5 = inlined_call_operand.vmem [shape: f32[2,9,192], index: 5, kind: output, shape index: {0}]
  %s6 = inlined_call_operand.vmem [shape: f32[9,128], index: 6, kind: output, shape index: {1}]
  %s7 = inlined_call_operand.vmem [shape: f32[2,9,32], index: 7, kind: output, shape index: {2}]
  %8 = xla_tuple %s5, %s6, %s7
  %s9 = sld [smem:[#allocation0]]
  $region46: #{individual_landmark_net_forward.1} parent=0
    _
  %s11 = ssub.s32 1, %s9
  %s12 = scalar_select 0, %s11, %s9
  // Predicated region
  $region2: #{individual_landmark_net_forward.1} parent=0 // pred_check
    _
  $region3: #{individual_landmark_net_forward.1} parent=0 // pred_check_branch
    %14 = sbr.rel (0) target = $region5
  $region4: #{individual_landmark_net_forward.1} parent=0 // pred_region
    _
  $region5: #{individual_landmark_net_forward.1} parent=0 // pred_fallthru
    _
  // Predicated region
  $region6: #{individual_landmark_net_forward.1} parent=0 // pred_check
    _
  $region7: #{individual_landmark_net_forward.1} parent=0 // pred_check_branch
    %16 = sbr.rel (0) target = $region9
  $region8: #{individual_landmark_net_forward.1} parent=0 // pred_region
    _
  $region9: #{individual_landmark_net_forward.1} parent=0 // pred_fallthru
    _
  // Predicated region
  $region10: #{individual_landmark_net_forward.1} parent=0 // pred_check
    _
  $region11: #{individual_landmark_net_forward.1} parent=0 // pred_check_branch
    %18 = sbr.rel (0) target = $region13
  $region12: #{individual_landmark_net_forward.1} parent=0 // pred_region
    _
  $region13: #{individual_landmark_net_forward.1} parent=0 // pred_fallthru
    _
  // Predicated region
  $region14: #{individual_landmark_net_forward.1} parent=0 // pred_check
    _
  $region15: #{individual_landmark_net_forward.1} parent=0 // pred_check_branch
    %20 = sbr.rel (0) target = $region17
  $region16: #{individual_landmark_net_forward.1} parent=0 // pred_region
    _
  $region17: #{individual_landmark_net_forward.1} parent=0 // pred_fallthru
    _
  // Predicated region
  $region18: #{individual_landmark_net_forward.1} parent=0 // pred_check
    _
  $region19: #{individual_landmark_net_forward.1} parent=0 // pred_check_branch
    %22 = sbr.rel (0) target = $region21
  $region20: #{individual_landmark_net_forward.1} parent=0 // pred_region
    _
  $region21: #{individual_landmark_net_forward.1} parent=0 // pred_fallthru
    _
  %v23 = vld [vmem:[%s0] sm:$0xff]
  %v24 = vld [vmem:[%s0 + $0x8] sm:$0xff]
  %v25 = vld [vmem:[%s0 + $0x10] sm:$0xff]
  %v26 = vld [vmem:[%s0 + $0x18] sm:$0xff]
  %v27 = vld [vmem:[%s0 + $0x20] sm:$0xff]
  %v28 = vld [vmem:[%s0 + $0x28] sm:$0xff]
  %v29 = vld [vmem:[%s0 + $0x30] sm:$0xff]
  %v30 = vld [vmem:[%s0 + $0x38] sm:$0xff]
  %v31 = vld [vmem:[%s0 + $0x40] sm:$0xff]
  %v32 = vld [vmem:[%s0 + $0x48] sm:$0xff]
  %v33 = vld [vmem:[%s0 + $0x50] sm:$0xff]
  %v34 = vld [vmem:[%s0 + $0x58] sm:$0xff]
  %v35 = vld [vmem:[%s0 + $0x60] sm:$0xff]
  %v36 = vld [vmem:[%s0 + $0x68] sm:$0xff]
  %v37 = vld [vmem:[%s0 + $0x70] sm:$0xff]
  %v38 = vld [vmem:[%s0 + $0x78] sm:$0xff]
  %v39 = vld [vmem:[%s0 + $0x80] sm:$0xff]
  %v40 = vld [vmem:[%s0 + $0x88] sm:$0xff]
  %v41 = vld [vmem:[%s0 + $0x90] sm:$0xff]
  %v42 = vld [vmem:[%s0 + $0x98] sm:$0xff]
  %v43 = vld [vmem:[%s0 + $0xa0] sm:$0xff]
  %v44 = vld [vmem:[%s0 + $0xa8] sm:$0xff]
  %v45 = vld [vmem:[%s0 + $0xb0] sm:$0xff]
  %v46 = vld [vmem:[%s0 + $0xb8] sm:$0xff]
  %v47 = vld [vmem:[%s1] sm:$0xff]
  %v48 = vld [vmem:[%s1 + $0x8] sm:$0xff]
  %v49 = vld [vmem:[%s1 + $0x10] sm:$0x1]
  %v50 = vld [vmem:[%s1 + $0x18] sm:$0x1]
  %vm51 = vcmask 523264
  %v53 = vsel %vm51, %v48, 0
  %v56 = vsel %vm51, %v50, 0
  %58 = vmatprep.subr.mxu0 0.0
  %59 = vmatpush1.msra.mxu0 %v38
  %60 = vmatprep.subr.mxu0 0.0
  %61 = vmatpush1.msra.mxu0 %v37
  %62 = vmatprep.subr.mxu0 0.0
  %63 = vmatpush1.msra.mxu0 %v36
  %64 = vmatprep.subr.mxu0 0.0
  %65 = vmatpush1.msra.mxu0 %v35
  %66 = vmatprep.subr.mxu0 0.0
  %67 = vmatpush1.msra.mxu0 %v34
  %68 = vmatprep.subr.mxu0 0.0
  %69 = vmatpush1.msra.mxu0 %v33
  %70 = vmatprep.subr.mxu0 0.0
  %71 = vmatpush1.msra.mxu0 %v32
  %72 = vmatprep.subr.mxu0 0.0
  %73 = vmatpush1.msra.mxu0 %v31
  %74 = vmatprep.subr.mxu0 0.0
  %75 = vmatpush1.msra.mxu0 %v30
  %76 = vmatprep.subr.mxu0 0.0
  %77 = vmatpush1.msra.mxu0 %v29
  %78 = vmatprep.subr.mxu0 0.0
  %79 = vmatpush1.msra.mxu0 %v28
  %80 = vmatprep.subr.mxu0 0.0
  %81 = vmatpush1.msra.mxu0 %v27
  %82 = vmatprep.subr.mxu0 0.0
  %83 = vmatpush1.msra.mxu0 %v26
  %84 = vmatprep.subr.mxu0 0.0
  %85 = vmatpush1.msra.mxu0 %v25
  %86 = vmatprep.subr.mxu0 0.0
  %87 = vmatpush1.msra.mxu0 %v24
  %88 = vmatprep.subr.mxu0 0.0
  %89 = vmatpush1.msra.mxu0 %v23
  %90 = vmatprep.subr.mxu0 0.0
  %91 = vmatpush2.msra.mxu0 0.0
  %92 = vmatprep.subr.mxu0 0.0
  %93 = vmatpush2.msra.mxu0 0.0
  %94 = vmatprep.subr.mxu0 0.0
  %95 = vmatpush2.msra.mxu0 0.0
  %96 = vmatprep.subr.mxu0 0.0
  %97 = vmatpush2.msra.mxu0 0.0
  %98 = vmatprep.subr.mxu0 0.0
  %99 = vmatpush2.msra.mxu0 0.0
  %100 = vmatprep.subr.mxu0 0.0
  %101 = vmatpush2.msra.mxu0 0.0
  %102 = vmatprep.subr.mxu0 0.0
  %103 = vmatpush2.msra.mxu0 0.0
  %104 = vmatprep.subr.mxu0 0.0
  %105 = vmatpush2.msra.mxu0 0.0
  %106 = vmatprep.subr.mxu0 0.0
  %107 = vmatpush2.msra.mxu0 %v46
  %108 = vmatprep.subr.mxu0 0.0
  %109 = vmatpush2.msra.mxu0 %v45
  %110 = vmatprep.subr.mxu0 0.0
  %111 = vmatpush2.msra.mxu0 %v44
  %112 = vmatprep.subr.mxu0 0.0
  %113 = vmatpush2.msra.mxu0 %v43
  %114 = vmatprep.subr.mxu0 0.0
  %115 = vmatpush2.msra.mxu0 %v42
  %116 = vmatprep.subr.mxu0 0.0
  %117 = vmatpush2.msra.mxu0 %v41
  %118 = vmatprep.subr.mxu0 0.0
  %119 = vmatpush2.msra.mxu0 %v40
  %120 = vmatprep.subr.mxu0 0.0
  %121 = vmatpush2.msra.mxu0 %v39
  %122 = vmatprep.mubr.f32.mxu0 %v53
  %123 = vmatmul.mubr.f32.gmra.mxu0 %v47
  %v124 = vpop.f32.mrf.mxu0
  %v125 = vadd.f32 0.0, %v124
  %v126 = vpop.f32.mrf.mxu0
  %127 = vmatprep.mubr.f32.mxu0 %v56
  %128 = vmatmul.mubr.f32.gmra.mxu0 %v49
  %v129 = vpop.f32.mrf.mxu0
  %v130 = vadd.f32 0.0, %v129
  %v131 = vpop.f32.mrf.mxu0
  %132 = vdwg.mxu0
  %v133 = vld [vmem:[%s2] sm:$0xff]
  %v134 = vld [vmem:[%s2 + $0x8] sm:$0x1]
  %136 = vset.pattern.permute.xlu0 0
  %137 = vperm.xlu0 %136, %v133
  %v138 = vpop.permute.xlu0 %137
  %141 = vset.pattern.permute.xlu0 0
  %142 = vperm.xlu0 %141, %v134
  %v143 = vpop.permute.xlu0 %142
  %v145 = vsub.f32 %v125, %v138
  %v146 = vsub.f32 %v130, %v143
  %vm147 = vcmask 1040384
  %v148 = vsel %vm147, %v146, -inf
  %v149 = vmax.f32 %v145, %v148
  %v150 = vrot.slane %v149, 4
  %v151 = vmax.f32 %v149, %v150
  %v152 = vrot.slane %v151, 2
  %v153 = vmax.f32 %v151, %v152
  %v154 = vrot.slane %v153, 1
  %v155 = vmax.f32 %v153, %v154
  %v156 = vsub.f32 %v145, %v155
  %v157 = vsub.f32 %v146, %v155
  %v158 = vmul.f32 %v156, 1.442695
  %v159 = vpow.pop %v158
  %v160 = vmul.f32 %v157, 1.442695
  %v161 = vpow.pop %v160
  %v162 = vsel %vm147, %v161, 0.0
  %v163 = vadd.f32 %v159, %v162
  %v164 = vrot.slane %v163, 4
  %v165 = vadd.f32 %v163, %v164
  %v166 = vrot.slane %v165, 2
  %v167 = vadd.f32 %v165, %v166
  %v168 = vrot.slane %v167, 1
  %v169 = vadd.f32 %v167, %v168
  %v170 = vrcp.pop %v169
  %v171 = vmul.f32 %v159, %v170
  %v172 = vmul.f32 %v161, %v170
  %173 = vst [vmem:[%s6] sm:$0xff] %v171
  %174 = vst [vmem:[%s6 + $0x8] sm:$0x1] %v172
  %v176 = vsel %vm51, %v171, 0
  %v179 = vsel %vm51, %v172, 0
  %v182 = vsel %vm51, %v23, 0
  %v185 = vsel %vm51, %v24, 0
  %v188 = vsel %vm51, %v25, 0
  %v191 = vsel %vm51, %v26, 0
  %v194 = vsel %vm51, %v27, 0
  %v197 = vsel %vm51, %v28, 0
  %v200 = vsel %vm51, %v29, 0
  %v203 = vsel %vm51, %v30, 0
  %v206 = vsel %vm51, %v31, 0
  %v209 = vsel %vm51, %v32, 0
  %v212 = vsel %vm51, %v33, 0
  %v215 = vsel %vm51, %v34, 0
  %v218 = vsel %vm51, %v35, 0
  %v221 = vsel %vm51, %v36, 0
  %v224 = vsel %vm51, %v37, 0
  %v227 = vsel %vm51, %v38, 0
  %v230 = vsel %vm51, %v39, 0
  %v233 = vsel %vm51, %v40, 0
  %v236 = vsel %vm51, %v41, 0
  %v239 = vsel %vm51, %v42, 0
  %v242 = vsel %vm51, %v43, 0
  %v245 = vsel %vm51, %v44, 0
  %v248 = vsel %vm51, %v45, 0
  %v251 = vsel %vm51, %v46, 0
  %253 = vmatprep.subr.mxu0 0.0
  %254 = vmatpush1.xpose.msra.mxu0 %v227
  %255 = vmatprep.subr.mxu0 0.0
  %256 = vmatpush1.xpose.msra.mxu0 %v224
  %257 = vmatprep.subr.mxu0 0.0
  %258 = vmatpush1.xpose.msra.mxu0 %v221
  %259 = vmatprep.subr.mxu0 0.0
  %260 = vmatpush1.xpose.msra.mxu0 %v218
  %261 = vmatprep.subr.mxu0 0.0
  %262 = vmatpush1.xpose.msra.mxu0 %v215
  %263 = vmatprep.subr.mxu0 0.0
  %264 = vmatpush1.xpose.msra.mxu0 %v212
  %265 = vmatprep.subr.mxu0 0.0
  %266 = vmatpush1.xpose.msra.mxu0 %v209
  %267 = vmatprep.subr.mxu0 0.0
  %268 = vmatpush1.xpose.msra.mxu0 %v206
  %269 = vmatprep.subr.mxu0 0.0
  %270 = vmatpush1.xpose.msra.mxu0 %v203
  %271 = vmatprep.subr.mxu0 0.0
  %272 = vmatpush1.xpose.msra.mxu0 %v200
  %273 = vmatprep.subr.mxu0 0.0
  %274 = vmatpush1.xpose.msra.mxu0 %v197
  %275 = vmatprep.subr.mxu0 0.0
  %276 = vmatpush1.xpose.msra.mxu0 %v194
  %277 = vmatprep.subr.mxu0 0.0
  %278 = vmatpush1.xpose.msra.mxu0 %v191
  %279 = vmatprep.subr.mxu0 0.0
  %280 = vmatpush1.xpose.msra.mxu0 %v188
  %281 = vmatprep.subr.mxu0 0.0
  %282 = vmatpush1.xpose.msra.mxu0 %v185
  %283 = vmatprep.subr.mxu0 0.0
  %284 = vmatpush1.xpose.msra.mxu0 %v182
  %285 = vmatprep.subr.mxu0 0.0
  %286 = vmatpush2.xpose.msra.mxu0 0.0
  %287 = vmatprep.subr.mxu0 0.0
  %288 = vmatpush2.xpose.msra.mxu0 0.0
  %289 = vmatprep.subr.mxu0 0.0
  %290 = vmatpush2.xpose.msra.mxu0 0.0
  %291 = vmatprep.subr.mxu0 0.0
  %292 = vmatpush2.xpose.msra.mxu0 0.0
  %293 = vmatprep.subr.mxu0 0.0
  %294 = vmatpush2.xpose.msra.mxu0 0.0
  %295 = vmatprep.subr.mxu0 0.0
  %296 = vmatpush2.xpose.msra.mxu0 0.0
  %297 = vmatprep.subr.mxu0 0.0
  %298 = vmatpush2.xpose.msra.mxu0 0.0
  %299 = vmatprep.subr.mxu0 0.0
  %300 = vmatpush2.xpose.msra.mxu0 0.0
  %301 = vmatprep.subr.mxu0 0.0
  %302 = vmatpush2.xpose.msra.mxu0 %v251
  %303 = vmatprep.subr.mxu0 0.0
  %304 = vmatpush2.xpose.msra.mxu0 %v248
  %305 = vmatprep.subr.mxu0 0.0
  %306 = vmatpush2.xpose.msra.mxu0 %v245
  %307 = vmatprep.subr.mxu0 0.0
  %308 = vmatpush2.xpose.msra.mxu0 %v242
  %309 = vmatprep.subr.mxu0 0.0
  %310 = vmatpush2.xpose.msra.mxu0 %v239
  %311 = vmatprep.subr.mxu0 0.0
  %312 = vmatpush2.xpose.msra.mxu0 %v236
  %313 = vmatprep.subr.mxu0 0.0
  %314 = vmatpush2.xpose.msra.mxu0 %v233
  %315 = vmatprep.subr.mxu0 0.0
  %316 = vmatpush2.xpose.msra.mxu0 %v230
  %317 = vmatprep.mubr.f32.mxu0 0.0
  %318 = vmatmul.mubr.f32.gmra.mxu0 %v176
  %v319 = vpop.f32.mrf.mxu0
  %v320 = vadd.f32 0.0, %v319
  %v321 = vpop.f32.mrf.mxu0
  %v322 = vadd.f32 0.0, %v321
  %323 = vmatprep.mubr.f32.mxu0 0.0
  %324 = vmatmul.mubr.f32.gmra.mxu0 %v179
  %v325 = vpop.f32.mrf.mxu0
  %v326 = vadd.f32 0.0, %v325
  %v327 = vpop.f32.mrf.mxu0
  %v328 = vadd.f32 0.0, %v327
  %329 = vdwg.mxu0
  %v330 = vmul.f32 %v320, 0.015625
  %v331 = vmul.f32 %v322, 0.015625
  %v332 = vmul.f32 %v326, 0.015625
  %v333 = vmul.f32 %v328, 0.015625
  %334 = vst [vmem:[%s5] sm:$0xff] %v330
  %335 = vst.msk [vmem:[%s5 + $0x8] sm:$0xff] %vm51, %v331
  %336 = vst [vmem:[%s5 + $0x10] sm:$0x1] %v332
  %vm337 = vcmask 516096
  %338 = vst.msk [vmem:[%s5 + $0x18] sm:$0x1] %vm337, %v333
  %v339 = vld [vmem:[%s3] sm:$0xff]
  %v340 = vld [vmem:[%s3 + $0x8] sm:$0xff]
  %v341 = vld [vmem:[%s3 + $0x10] sm:$0x1]
  %v342 = vld [vmem:[%s3 + $0x18] sm:$0x1]
  %v343 = vmul.f32 %v330, %v339
  %v344 = vmul.f32 %v331, %v340
  %v345 = vmul.f32 %v332, %v341
  %v346 = vmul.f32 %v333, %v342
  %v347 = vld [vmem:[%s4] sm:$0xff]
  %v348 = vld [vmem:[%s4 + $0x8] sm:$0xff]
  %v349 = vld [vmem:[%s4 + $0x10] sm:$0xff]
  %v350 = vld [vmem:[%s4 + $0x18] sm:$0xff]
  %v351 = vld [vmem:[%s4 + $0x20] sm:$0xff]
  %v352 = vld [vmem:[%s4 + $0x28] sm:$0xff]
  %v353 = vld [vmem:[%s4 + $0x30] sm:$0xff]
  %v354 = vld [vmem:[%s4 + $0x38] sm:$0xff]
  %v355 = vld [vmem:[%s4 + $0x40] sm:$0xff]
  %v356 = vld [vmem:[%s4 + $0x48] sm:$0xff]
  %v357 = vld [vmem:[%s4 + $0x50] sm:$0xff]
  %v358 = vld [vmem:[%s4 + $0x58] sm:$0xff]
  %v359 = vld [vmem:[%s4 + $0x60] sm:$0xff]
  %v360 = vld [vmem:[%s4 + $0x68] sm:$0xff]
  %v361 = vld [vmem:[%s4 + $0x70] sm:$0xff]
  %v362 = vld [vmem:[%s4 + $0x78] sm:$0xff]
  %v363 = vld [vmem:[%s4 + $0x80] sm:$0xff]
  %v364 = vld [vmem:[%s4 + $0x88] sm:$0xff]
  %v365 = vld [vmem:[%s4 + $0x90] sm:$0xff]
  %v366 = vld [vmem:[%s4 + $0x98] sm:$0xff]
  %v367 = vld [vmem:[%s4 + $0xa0] sm:$0xff]
  %v368 = vld [vmem:[%s4 + $0xa8] sm:$0xff]
  %v369 = vld [vmem:[%s4 + $0xb0] sm:$0xff]
  %v370 = vld [vmem:[%s4 + $0xb8] sm:$0xff]
  %v372 = vsel %vm51, %v344, 0
  %v375 = vsel %vm51, %v346, 0
  %377 = vmatprep.subr.mxu0 0.0
  %378 = vmatpush1.msra.mxu0 %v362
  %379 = vmatprep.subr.mxu0 0.0
  %380 = vmatpush1.msra.mxu0 %v361
  %381 = vmatprep.subr.mxu0 0.0
  %382 = vmatpush1.msra.mxu0 %v360
  %383 = vmatprep.subr.mxu0 0.0
  %384 = vmatpush1.msra.mxu0 %v359
  %385 = vmatprep.subr.mxu0 0.0
  %386 = vmatpush1.msra.mxu0 %v358
  %387 = vmatprep.subr.mxu0 0.0
  %388 = vmatpush1.msra.mxu0 %v357
  %389 = vmatprep.subr.mxu0 0.0
  %390 = vmatpush1.msra.mxu0 %v356
  %391 = vmatprep.subr.mxu0 0.0
  %392 = vmatpush1.msra.mxu0 %v355
  %393 = vmatprep.subr.mxu0 0.0
  %394 = vmatpush1.msra.mxu0 %v354
  %395 = vmatprep.subr.mxu0 0.0
  %396 = vmatpush1.msra.mxu0 %v353
  %397 = vmatprep.subr.mxu0 0.0
  %398 = vmatpush1.msra.mxu0 %v352
  %399 = vmatprep.subr.mxu0 0.0
  %400 = vmatpush1.msra.mxu0 %v351
  %401 = vmatprep.subr.mxu0 0.0
  %402 = vmatpush1.msra.mxu0 %v350
  %403 = vmatprep.subr.mxu0 0.0
  %404 = vmatpush1.msra.mxu0 %v349
  %405 = vmatprep.subr.mxu0 0.0
  %406 = vmatpush1.msra.mxu0 %v348
  %407 = vmatprep.subr.mxu0 0.0
  %408 = vmatpush1.msra.mxu0 %v347
  %409 = vmatprep.subr.mxu0 0.0
  %410 = vmatpush2.msra.mxu0 0.0
  %411 = vmatprep.subr.mxu0 0.0
  %412 = vmatpush2.msra.mxu0 0.0
  %413 = vmatprep.subr.mxu0 0.0
  %414 = vmatpush2.msra.mxu0 0.0
  %415 = vmatprep.subr.mxu0 0.0
  %416 = vmatpush2.msra.mxu0 0.0
  %417 = vmatprep.subr.mxu0 0.0
  %418 = vmatpush2.msra.mxu0 0.0
  %419 = vmatprep.subr.mxu0 0.0
  %420 = vmatpush2.msra.mxu0 0.0
  %421 = vmatprep.subr.mxu0 0.0
  %422 = vmatpush2.msra.mxu0 0.0
  %423 = vmatprep.subr.mxu0 0.0
  %424 = vmatpush2.msra.mxu0 0.0
  %425 = vmatprep.subr.mxu0 0.0
  %426 = vmatpush2.msra.mxu0 %v370
  %427 = vmatprep.subr.mxu0 0.0
  %428 = vmatpush2.msra.mxu0 %v369
  %429 = vmatprep.subr.mxu0 0.0
  %430 = vmatpush2.msra.mxu0 %v368
  %431 = vmatprep.subr.mxu0 0.0
  %432 = vmatpush2.msra.mxu0 %v367
  %433 = vmatprep.subr.mxu0 0.0
  %434 = vmatpush2.msra.mxu0 %v366
  %435 = vmatprep.subr.mxu0 0.0
  %436 = vmatpush2.msra.mxu0 %v365
  %437 = vmatprep.subr.mxu0 0.0
  %438 = vmatpush2.msra.mxu0 %v364
  %439 = vmatprep.subr.mxu0 0.0
  %440 = vmatpush2.msra.mxu0 %v363
  %441 = vmatprep.mubr.f32.mxu0 %v372
  %442 = vmatmul.mubr.f32.gmra.mxu0 %v343
  %v443 = vpop.f32.mrf.mxu0
  %v444 = vadd.f32 0.0, %v443
  %v445 = vpop.f32.mrf.mxu0
  %446 = vmatprep.mubr.f32.mxu0 %v375
  %447 = vmatmul.mubr.f32.gmra.mxu0 %v345
  %v448 = vpop.f32.mrf.mxu0
  %v449 = vadd.f32 0.0, %v448
  %v450 = vpop.f32.mrf.mxu0
  %451 = vdwg.mxu0
  %vm452 = vcmask 261120
  %453 = vst.msk [vmem:[%s7] sm:$0xff] %vm452, %v444
  %vm454 = vcmask 253952
  %455 = vst.msk [vmem:[%s7 + $0x8] sm:$0x1] %vm454, %v449
  %456 = vrot.lane.b32.xlu0 %v171, 64
  %v457 = vpop.permute.xlu0 %456
  %458 = vrot.lane.b32.xlu0 %v172, 64
  %v459 = vpop.permute.xlu0 %458
  %460 = vrot.lane.b32.xlu0 %v23, 64
  %v461 = vpop.permute.xlu0 %460
  %462 = vrot.lane.b32.xlu0 %v24, 64
  %v463 = vpop.permute.xlu0 %462
  %464 = vrot.lane.b32.xlu0 %v25, 64
  %v465 = vpop.permute.xlu0 %464
  %466 = vrot.lane.b32.xlu0 %v26, 64
  %v467 = vpop.permute.xlu0 %466
  %468 = vrot.lane.b32.xlu0 %v27, 64
  %v469 = vpop.permute.xlu0 %468
  %470 = vrot.lane.b32.xlu0 %v28, 64
  %v471 = vpop.permute.xlu0 %470
  %472 = vrot.lane.b32.xlu0 %v29, 64
  %v473 = vpop.permute.xlu0 %472
  %474 = vrot.lane.b32.xlu0 %v30, 64
  %v475 = vpop.permute.xlu0 %474
  %476 = vrot.lane.b32.xlu0 %v31, 64
  %v477 = vpop.permute.xlu0 %476
  %478 = vrot.lane.b32.xlu0 %v32, 64
  %v479 = vpop.permute.xlu0 %478
  %480 = vrot.lane.b32.xlu0 %v33, 64
  %v481 = vpop.permute.xlu0 %480
  %482 = vrot.lane.b32.xlu0 %v34, 64
  %v483 = vpop.permute.xlu0 %482
  %484 = vrot.lane.b32.xlu0 %v35, 64
  %v485 = vpop.permute.xlu0 %484
  %486 = vrot.lane.b32.xlu0 %v36, 64
  %v487 = vpop.permute.xlu0 %486
  %488 = vrot.lane.b32.xlu0 %v37, 64
  %v489 = vpop.permute.xlu0 %488
  %490 = vrot.lane.b32.xlu0 %v38, 64
  %v491 = vpop.permute.xlu0 %490
  %492 = vrot.lane.b32.xlu0 %v39, 64
  %v493 = vpop.permute.xlu0 %492
  %494 = vrot.lane.b32.xlu0 %v40, 64
  %v495 = vpop.permute.xlu0 %494
  %496 = vrot.lane.b32.xlu0 %v41, 64
  %v497 = vpop.permute.xlu0 %496
  %498 = vrot.lane.b32.xlu0 %v42, 64
  %v499 = vpop.permute.xlu0 %498
  %500 = vrot.lane.b32.xlu0 %v43, 64
  %v501 = vpop.permute.xlu0 %500
  %502 = vrot.lane.b32.xlu0 %v44, 64
  %v503 = vpop.permute.xlu0 %502
  %504 = vrot.lane.b32.xlu0 %v45, 64
  %v505 = vpop.permute.xlu0 %504
  %506 = vrot.lane.b32.xlu0 %v46, 64
  %v507 = vpop.permute.xlu0 %506
  %v508 = vsel %vm51, %v457, 0
  %v510 = vsel %vm51, %v459, 0
  %v512 = vsel %vm51, %v461, 0
  %v514 = vsel %vm51, %v463, 0
  %v516 = vsel %vm51, %v465, 0
  %v518 = vsel %vm51, %v467, 0
  %v520 = vsel %vm51, %v469, 0
  %v522 = vsel %vm51, %v471, 0
  %v524 = vsel %vm51, %v473, 0
  %v526 = vsel %vm51, %v475, 0
  %v528 = vsel %vm51, %v477, 0
  %v530 = vsel %vm51, %v479, 0
  %v532 = vsel %vm51, %v481, 0
  %v534 = vsel %vm51, %v483, 0
  %v536 = vsel %vm51, %v485, 0
  %v538 = vsel %vm51, %v487, 0
  %v540 = vsel %vm51, %v489, 0
  %v542 = vsel %vm51, %v491, 0
  %v544 = vsel %vm51, %v493, 0
  %v546 = vsel %vm51, %v495, 0
  %v548 = vsel %vm51, %v497, 0
  %v550 = vsel %vm51, %v499, 0
  %v552 = vsel %vm51, %v501, 0
  %v554 = vsel %vm51, %v503, 0
  %v556 = vsel %vm51, %v505, 0
  %v558 = vsel %vm51, %v507, 0
  %560 = vmatprep.subr.mxu0 0.0
  %561 = vmatpush1.xpose.msra.mxu0 %v542
  %562 = vmatprep.subr.mxu0 0.0
  %563 = vmatpush1.xpose.msra.mxu0 %v540
  %564 = vmatprep.subr.mxu0 0.0
  %565 = vmatpush1.xpose.msra.mxu0 %v538
  %566 = vmatprep.subr.mxu0 0.0
  %567 = vmatpush1.xpose.msra.mxu0 %v536
  %568 = vmatprep.subr.mxu0 0.0
  %569 = vmatpush1.xpose.msra.mxu0 %v534
  %570 = vmatprep.subr.mxu0 0.0
  %571 = vmatpush1.xpose.msra.mxu0 %v532
  %572 = vmatprep.subr.mxu0 0.0
  %573 = vmatpush1.xpose.msra.mxu0 %v530
  %574 = vmatprep.subr.mxu0 0.0
  %575 = vmatpush1.xpose.msra.mxu0 %v528
  %576 = vmatprep.subr.mxu0 0.0
  %577 = vmatpush1.xpose.msra.mxu0 %v526
  %578 = vmatprep.subr.mxu0 0.0
  %579 = vmatpush1.xpose.msra.mxu0 %v524
  %580 = vmatprep.subr.mxu0 0.0
  %581 = vmatpush1.xpose.msra.mxu0 %v522
  %582 = vmatprep.subr.mxu0 0.0
  %583 = vmatpush1.xpose.msra.mxu0 %v520
  %584 = vmatprep.subr.mxu0 0.0
  %585 = vmatpush1.xpose.msra.mxu0 %v518
  %586 = vmatprep.subr.mxu0 0.0
  %587 = vmatpush1.xpose.msra.mxu0 %v516
  %588 = vmatprep.subr.mxu0 0.0
  %589 = vmatpush1.xpose.msra.mxu0 %v514
  %590 = vmatprep.subr.mxu0 0.0
  %591 = vmatpush1.xpose.msra.mxu0 %v512
  %592 = vmatprep.subr.mxu0 0.0
  %593 = vmatpush2.xpose.msra.mxu0 0.0
  %594 = vmatprep.subr.mxu0 0.0
  %595 = vmatpush2.xpose.msra.mxu0 0.0
  %596 = vmatprep.subr.mxu0 0.0
  %597 = vmatpush2.xpose.msra.mxu0 0.0
  %598 = vmatprep.subr.mxu0 0.0
  %599 = vmatpush2.xpose.msra.mxu0 0.0
  %600 = vmatprep.subr.mxu0 0.0
  %601 = vmatpush2.xpose.msra.mxu0 0.0
  %602 = vmatprep.subr.mxu0 0.0
  %603 = vmatpush2.xpose.msra.mxu0 0.0
  %604 = vmatprep.subr.mxu0 0.0
  %605 = vmatpush2.xpose.msra.mxu0 0.0
  %606 = vmatprep.subr.mxu0 0.0
  %607 = vmatpush2.xpose.msra.mxu0 0.0
  %608 = vmatprep.subr.mxu0 0.0
  %609 = vmatpush2.xpose.msra.mxu0 %v558
  %610 = vmatprep.subr.mxu0 0.0
  %611 = vmatpush2.xpose.msra.mxu0 %v556
  %612 = vmatprep.subr.mxu0 0.0
  %613 = vmatpush2.xpose.msra.mxu0 %v554
  %614 = vmatprep.subr.mxu0 0.0
  %615 = vmatpush2.xpose.msra.mxu0 %v552
  %616 = vmatprep.subr.mxu0 0.0
  %617 = vmatpush2.xpose.msra.mxu0 %v550
  %618 = vmatprep.subr.mxu0 0.0
  %619 = vmatpush2.xpose.msra.mxu0 %v548
  %620 = vmatprep.subr.mxu0 0.0
  %621 = vmatpush2.xpose.msra.mxu0 %v546
  %622 = vmatprep.subr.mxu0 0.0
  %623 = vmatpush2.xpose.msra.mxu0 %v544
  %624 = vmatprep.mubr.f32.mxu0 0.0
  %625 = vmatmul.mubr.f32.gmra.mxu0 %v508
  %v626 = vpop.f32.mrf.mxu0
  %v627 = vadd.f32 0.0, %v626
  %v628 = vpop.f32.mrf.mxu0
  %v629 = vadd.f32 0.0, %v628
  %630 = vmatprep.mubr.f32.mxu0 0.0
  %631 = vmatmul.mubr.f32.gmra.mxu0 %v510
  %v632 = vpop.f32.mrf.mxu0
  %v633 = vadd.f32 0.0, %v632
  %v634 = vpop.f32.mrf.mxu0
  %v635 = vadd.f32 0.0, %v634
  %636 = vdwg.mxu0
  %v637 = vmul.f32 %v627, 0.015625
  %v638 = vmul.f32 %v629, 0.015625
  %v639 = vmul.f32 %v633, 0.015625
  %v640 = vmul.f32 %v635, 0.015625
  %s641 = scalar_lea.vmem %s5, 32
  %642 = vst [vmem:[%s641] sm:$0xff] %v637
  %643 = vst.msk [vmem:[%s641 + $0x8] sm:$0xff] %vm51, %v638
  %644 = vst [vmem:[%s641 + $0x10] sm:$0x1] %v639
  %645 = vst.msk [vmem:[%s641 + $0x18] sm:$0x1] %vm337, %v640
  %v646 = vld [vmem:[%s3] sm:$0xff]
  %v647 = vld [vmem:[%s3 + $0x8] sm:$0xff]
  %v648 = vld [vmem:[%s3 + $0x10] sm:$0x1]
  %v649 = vld [vmem:[%s3 + $0x18] sm:$0x1]
  %v650 = vmul.f32 %v637, %v646
  %v651 = vmul.f32 %v638, %v647
  %v652 = vmul.f32 %v639, %v648
  %v653 = vmul.f32 %v640, %v649
  %v654 = vld [vmem:[%s4] sm:$0xff]
  %v655 = vld [vmem:[%s4 + $0x8] sm:$0xff]
  %v656 = vld [vmem:[%s4 + $0x10] sm:$0xff]
  %v657 = vld [vmem:[%s4 + $0x18] sm:$0xff]
  %v658 = vld [vmem:[%s4 + $0x20] sm:$0xff]
  %v659 = vld [vmem:[%s4 + $0x28] sm:$0xff]
  %v660 = vld [vmem:[%s4 + $0x30] sm:$0xff]
  %v661 = vld [vmem:[%s4 + $0x38] sm:$0xff]
  %v662 = vld [vmem:[%s4 + $0x40] sm:$0xff]
  %v663 = vld [vmem:[%s4 + $0x48] sm:$0xff]
  %v664 = vld [vmem:[%s4 + $0x50] sm:$0xff]
  %v665 = vld [vmem:[%s4 + $0x58] sm:$0xff]
  %v666 = vld [vmem:[%s4 + $0x60] sm:$0xff]
  %v667 = vld [vmem:[%s4 + $0x68] sm:$0xff]
  %v668 = vld [vmem:[%s4 + $0x70] sm:$0xff]
  %v669 = vld [vmem:[%s4 + $0x78] sm:$0xff]
  %v670 = vld [vmem:[%s4 + $0x80] sm:$0xff]
  %v671 = vld [vmem:[%s4 + $0x88] sm:$0xff]
  %v672 = vld [vmem:[%s4 + $0x90] sm:$0xff]
  %v673 = vld [vmem:[%s4 + $0x98] sm:$0xff]
  %v674 = vld [vmem:[%s4 + $0xa0] sm:$0xff]
  %v675 = vld [vmem:[%s4 + $0xa8] sm:$0xff]
  %v676 = vld [vmem:[%s4 + $0xb0] sm:$0xff]
  %v677 = vld [vmem:[%s4 + $0xb8] sm:$0xff]
  %v679 = vsel %vm51, %v651, 0
  %v682 = vsel %vm51, %v653, 0
  %684 = vmatprep.subr.mxu0 0.0
  %685 = vmatpush1.msra.mxu0 %v669
  %686 = vmatprep.subr.mxu0 0.0
  %687 = vmatpush1.msra.mxu0 %v668
  %688 = vmatprep.subr.mxu0 0.0
  %689 = vmatpush1.msra.mxu0 %v667
  %690 = vmatprep.subr.mxu0 0.0
  %691 = vmatpush1.msra.mxu0 %v666
  %692 = vmatprep.subr.mxu0 0.0
  %693 = vmatpush1.msra.mxu0 %v665
  %694 = vmatprep.subr.mxu0 0.0
  %695 = vmatpush1.msra.mxu0 %v664
  %696 = vmatprep.subr.mxu0 0.0
  %697 = vmatpush1.msra.mxu0 %v663
  %698 = vmatprep.subr.mxu0 0.0
  %699 = vmatpush1.msra.mxu0 %v662
  %700 = vmatprep.subr.mxu0 0.0
  %701 = vmatpush1.msra.mxu0 %v661
  %702 = vmatprep.subr.mxu0 0.0
  %703 = vmatpush1.msra.mxu0 %v660
  %704 = vmatprep.subr.mxu0 0.0
  %705 = vmatpush1.msra.mxu0 %v659
  %706 = vmatprep.subr.mxu0 0.0
  %707 = vmatpush1.msra.mxu0 %v658
  %708 = vmatprep.subr.mxu0 0.0
  %709 = vmatpush1.msra.mxu0 %v657
  %710 = vmatprep.subr.mxu0 0.0
  %711 = vmatpush1.msra.mxu0 %v656
  %712 = vmatprep.subr.mxu0 0.0
  %713 = vmatpush1.msra.mxu0 %v655
  %714 = vmatprep.subr.mxu0 0.0
  %715 = vmatpush1.msra.mxu0 %v654
  %716 = vmatprep.subr.mxu0 0.0
  %717 = vmatpush2.msra.mxu0 0.0
  %718 = vmatprep.subr.mxu0 0.0
  %719 = vmatpush2.msra.mxu0 0.0
  %720 = vmatprep.subr.mxu0 0.0
  %721 = vmatpush2.msra.mxu0 0.0
  %722 = vmatprep.subr.mxu0 0.0
  %723 = vmatpush2.msra.mxu0 0.0
  %724 = vmatprep.subr.mxu0 0.0
  %725 = vmatpush2.msra.mxu0 0.0
  %726 = vmatprep.subr.mxu0 0.0
  %727 = vmatpush2.msra.mxu0 0.0
  %728 = vmatprep.subr.mxu0 0.0
  %729 = vmatpush2.msra.mxu0 0.0
  %730 = vmatprep.subr.mxu0 0.0
  %731 = vmatpush2.msra.mxu0 0.0
  %732 = vmatprep.subr.mxu0 0.0
  %733 = vmatpush2.msra.mxu0 %v677
  %734 = vmatprep.subr.mxu0 0.0
  %735 = vmatpush2.msra.mxu0 %v676
  %736 = vmatprep.subr.mxu0 0.0
  %737 = vmatpush2.msra.mxu0 %v675
  %738 = vmatprep.subr.mxu0 0.0
  %739 = vmatpush2.msra.mxu0 %v674
  %740 = vmatprep.subr.mxu0 0.0
  %741 = vmatpush2.msra.mxu0 %v673
  %742 = vmatprep.subr.mxu0 0.0
  %743 = vmatpush2.msra.mxu0 %v672
  %744 = vmatprep.subr.mxu0 0.0
  %745 = vmatpush2.msra.mxu0 %v671
  %746 = vmatprep.subr.mxu0 0.0
  %747 = vmatpush2.msra.mxu0 %v670
  %748 = vmatprep.mubr.f32.mxu0 %v679
  %749 = vmatmul.mubr.f32.gmra.mxu0 %v650
  %v750 = vpop.f32.mrf.mxu0
  %v751 = vadd.f32 0.0, %v750
  %v752 = vpop.f32.mrf.mxu0
  %753 = vmatprep.mubr.f32.mxu0 %v682
  %754 = vmatmul.mubr.f32.gmra.mxu0 %v652
  %v755 = vpop.f32.mrf.mxu0
  %v756 = vadd.f32 0.0, %v755
  %v757 = vpop.f32.mrf.mxu0
  %758 = vdwg.mxu0
  %s759 = scalar_lea.vmem %s7, 16
  %760 = vst.msk [vmem:[%s759] sm:$0xff] %vm452, %v751
  %761 = vst.msk [vmem:[%s759 + $0x8] sm:$0x1] %vm454, %v756
  // Predicated region
  $region22: #{individual_landmark_net_forward.1} parent=0 // pred_check
    _
  $region23: #{individual_landmark_net_forward.1} parent=0 // pred_check_branch
    %763 = sbr.rel (0) target = $region25
  $region24: #{individual_landmark_net_forward.1} parent=0 // pred_region
    _
  $region25: #{individual_landmark_net_forward.1} parent=0 // pred_fallthru
    _
  // Predicated region
  $region26: #{individual_landmark_net_forward.1} parent=0 // pred_check
    _
  $region27: #{individual_landmark_net_forward.1} parent=0 // pred_check_branch
    %765 = sbr.rel (0) target = $region29
  $region28: #{individual_landmark_net_forward.1} parent=0 // pred_region
    _
  $region29: #{individual_landmark_net_forward.1} parent=0 // pred_fallthru
    _
  // Predicated region
  $region30: #{individual_landmark_net_forward.1} parent=0 // pred_check
    _
  $region31: #{individual_landmark_net_forward.1} parent=0 // pred_check_branch
    %767 = sbr.rel (0) target = $region33
  $region32: #{individual_landmark_net_forward.1} parent=0 // pred_region
    _
  $region33: #{individual_landmark_net_forward.1} parent=0 // pred_fallthru
    _
  // Predicated region
  $region34: #{individual_landmark_net_forward.1} parent=0 // pred_check
    _
  $region35: #{individual_landmark_net_forward.1} parent=0 // pred_check_branch
    %769 = sbr.rel (0) target = $region37
  $region36: #{individual_landmark_net_forward.1} parent=0 // pred_region
    _
  $region37: #{individual_landmark_net_forward.1} parent=0 // pred_fallthru
    _
  // Predicated region
  $region38: #{individual_landmark_net_forward.1} parent=0 // pred_check
    _
  $region39: #{individual_landmark_net_forward.1} parent=0 // pred_check_branch
    %771 = sbr.rel (0) target = $region41
  $region40: #{individual_landmark_net_forward.1} parent=0 // pred_region
    _
  $region41: #{individual_landmark_net_forward.1} parent=0 // pred_fallthru
    _
  // Predicated region
  $region42: #{individual_landmark_net_forward.1} parent=0 // pred_check
    _
  $region43: #{individual_landmark_net_forward.1} parent=0 // pred_check_branch
    %773 = sbr.rel (0) target = $region45
  $region44: #{individual_landmark_net_forward.1} parent=0 // pred_region
    _
  $region45: #{individual_landmark_net_forward.1} parent=0 // pred_fallthru
    _

</llo_original>
